<compile_context>
chip_gen: v7x
topology: tpu7x:2x2x1
jax: 0.10.0
libtpu: 0.0.40
codegen_flags: <defaults>
</compile_context>

<pallas_src>
import math

import numpy as np
import jax
import jax.numpy as jnp
from jax.experimental import pallas as pl
from jax.experimental.pallas import tpu as pltpu


def _round_up(x, m):
    return -(-x // m) * m


def _device_kind():
    try:
        return jax.devices()[0].device_kind.lower()
    except Exception:
        return ""


# ---------------------------------------------------------------------------
# Parameter construction (deterministic, mirrors julius LowPassFilters.__init__)
# ---------------------------------------------------------------------------
def _lowpass_filters(cutoffs, zeros=8.0):
    """Windowed-sinc lowpass FIRs (float64). Returns (filters [n, 2h+1], half_size)."""
    nonzero = [c for c in cutoffs if c > 0]
    half_size = int(zeros / min(nonzero) / 2)
    n_taps = 2 * half_size + 1
    if n_taps > 1:
        n = np.arange(n_taps, dtype=np.float64)
        window = 0.5 * (1.0 - np.cos(2.0 * np.pi * n / (n_taps - 1)))  # hann, periodic=False
    else:
        window = np.ones(1, dtype=np.float64)
    time = np.arange(-half_size, half_size + 1, dtype=np.float64)
    filters = []
    for cutoff in cutoffs:
        if cutoff == 0:
            filt = np.zeros_like(time)
        else:
            arg = 2.0 * cutoff * math.pi * time
            sinc = np.where(arg == 0.0, 1.0, np.sin(arg) / np.where(arg == 0.0, 1.0, arg))
            filt = 2.0 * cutoff * window * sinc
            filt = filt / filt.sum()          # normalize DC gain to 1
        filters.append(filt)
    return np.stack(filters), half_size


# ---------------------------------------------------------------------------
# Static block-banded matrices of the fused band filter
# ---------------------------------------------------------------------------
def _build_band_matrices(w_band, half_size, T, t_out, TB, n_tb_in, n_tb_out, pad):
    """out_blk[j] = sum_d x_blk[blk_id[j,d]] @ mats[mat_id[j,d]]  (skip if nz[j,d]==0).

    Replicate edge padding (pad=True) and the zero-padded input/output tails are
    folded into the matrices.  Only distinct matrices are stored; small int tables
    map (output time block j, neighbor slot d) -> (input block, matrix id, nonzero).
    """
    h = half_size
    L = w_band.shape[0]
    if pad:
        reach = _round_up(h, TB) // TB            # ceil(h / TB)
        lo, hi = -reach, reach
    else:
        lo, hi = 0, _round_up(2 * h, TB) // TB    # ceil(2h / TB)
    lo = max(lo, -(n_tb_out - 1))
    hi = min(hi, n_tb_in - 1)
    base = list(range(lo, hi + 1))
    # Neighbor visiting order [hi-1, ..., lo, hi]: block j ends on x block (j+hi)
    # and block j+1 starts on x block (j+1)+(hi-1) == (j+hi), so Pallas dedups the
    # x DMA at the time-block boundary.  Summation order is commutative (f32 acc).
    offsets = (base[-2::-1] + [base[-1]]) if len(base) > 1 else base
    n_nb = len(offsets)

    t_l = np.arange(TB)
    k = np.arange(L)
    w_col = np.broadcast_to(w_band[:, None], (L, TB))
    col_idx = np.broadcast_to(t_l[None, :], (L, TB))

    uniq, mat_list = {}, []
    mat_id = np.zeros((n_tb_out, n_nb), np.int32)
    blk_id = np.zeros((n_tb_out, n_nb), np.int32)
    nz = np.zeros((n_tb_out, n_nb), np.int32)
    for j in range(n_tb_out):
        t = j * TB + t_l                          # global output columns of block j
        valid_t = t < t_out
        if pad:
            c = np.clip(t[None, :] + k[:, None] - h, 0, T - 1)   # replicate edges
        else:
            c = t[None, :] + k[:, None]
        src_blk, src_row = c // TB, c % TB
        for d, off in enumerate(offsets):
            b = j + off
            blk_id[j, d] = int(np.clip(b, 0, n_tb_in - 1))
            M = np.zeros((TB, TB), np.float64)
            if 0 <= b < n_tb_in:
                mask = (src_blk == b) & valid_t[None, :]
                if mask.any():
                    np.add.at(M, (src_row[mask], col_idx[mask]), w_col[mask])
            nz[j, d] = 1 if np.any(M != 0.0) else 0
            key = M.tobytes()
            if key not in uniq:
                uniq[key] = len(mat_list)
                mat_list.append(M)
            mat_id[j, d] = uniq[key]
    mats = np.stack(mat_list)
    return mats, blk_id.reshape(-1), mat_id.reshape(-1), nz.reshape(-1), n_nb


# ---------------------------------------------------------------------------
# Wrapper + Pallas kernel
# ---------------------------------------------------------------------------
def bandpass_filter(x, cutoff_low, cutoff_high, stride=1, pad=True, zeros=8.0,
                    use_bf16=True):
    if cutoff_low > cutoff_high:
        raise ValueError(
            f"Lower cutoff {cutoff_low} should be less than higher cutoff {cutoff_high}.")
    if stride != 1:
        # TODO(synk): decimating stride > 1 (output column subsampling) not implemented.
        raise NotImplementedError("stride != 1 not supported")
    # TODO(synk): julius may route half_size > 32 through fftconv; the direct FIR below
    # is mathematically identical, so it is always used here.

    filters, h = _lowpass_filters([cutoff_low, cutoff_high], zeros)
    w_band = filters[1] - filters[0]             # fused bandpass taps (linearity)

    shape = x.shape
    T = int(shape[-1])
    t_out = T if pad else T - 2 * h
    if t_out <= 0:
        raise ValueError("Input too short for pad=False with this filter length.")
    B = int(np.prod(shape[:-1])) if len(shape) > 1 else 1

    x = jnp.asarray(x)
    out_dtype = x.dtype if x.dtype in (jnp.float32, jnp.bfloat16) else jnp.float32
    # Precision note: with use_bf16=True both MXU operands are bf16 (native MXU
    # datapath, f32 accumulation); relative error vs f64 is ~1e-3.  Set
    # use_bf16=False to keep f32 operands (slower multi-pass MXU).
    compute_dtype = jnp.bfloat16 if use_bf16 else jnp.float32

    kind = _device_kind()
    is_v5e = ("v5 lite" in kind) or ("v5e" in kind) or ("v5lite" in kind)
    two_tc = any(s in kind for s in ("v7", "v5p", "v4"))

    # Tiling: lane-dense time blocks matched to the MXU contraction depth
    # (128 on v5e, 256 on v6e/v7x); large row blocks.
    TB = 128 if is_v5e else 256
    TB = min(TB, _round_up(T, 128))
    n_tb_in = _round_up(T, TB) // TB
    n_tb_out = _round_up(t_out, TB) // TB
    Tp_in, Tp_out = n_tb_in * TB, n_tb_out * TB

    B8 = _round_up(max(B, 1), 8)
    BB = min(256, B8)
    # Only 2-TensorCore chips (v7x/v5p/v4) benefit from forcing >= 2 parallel
    # row blocks; on v5e/v6e a split just doubles grid-step overhead.
    if two_tc and B8 >= 16 and B8 // BB < 2:
        BB = max(8, _round_up(B8 // 2, 8))
    Bp = _round_up(max(B, 1), BB)

    mats, blk_tbl, mat_tbl, nz_tbl, n_nb = _build_band_matrices(
        w_band, h, T, t_out, TB, n_tb_in, n_tb_out, pad)
    n_mats = int(mats.shape[0])
    mats_dev = jnp.asarray(mats, dtype=compute_dtype)

    xf = x.reshape(B, T).astype(compute_dtype)
    if Bp != B or Tp_in != T:
        # Zero padding only (edge replication lives in the matrices); padded
        # rows/columns never feed a real output element and are sliced off below.
        xf = jnp.pad(xf, ((0, Bp - B), (0, Tp_in - T)))

    def kernel(blk_ref, mid_ref, nz_ref, x_ref, m_ref, o_ref, acc_ref):
        # blk_ref is consumed by the x index_map only.
        del blk_ref
        j = pl.program_id(1)
        d = pl.program_id(2)

        @pl.when(d == 0)
        def _init():
            acc_ref[...] = jnp.zeros_like(acc_ref)

        idx = j * n_nb + d

        @pl.when(nz_ref[idx] != 0)              # skip all-zero clamped edge blocks
        def _accum():
            m = m_ref[mid_ref[idx]]             # VMEM-resident matrix, picked in-kernel
            acc_ref[...] += jnp.dot(x_ref[...], m,
                                    preferred_element_type=jnp.float32)

        @pl.when(d == pl.num_programs(2) - 1)
        def _store():
            o_ref[...] = acc_ref[...].astype(o_ref.dtype)

    grid = (Bp // BB, n_tb_out, n_nb)
    out = pl.pallas_call(
        kernel,
        out_shape=jax.ShapeDtypeStruct((Bp, Tp_out), out_dtype),
        grid_spec=pltpu.PrefetchScalarGridSpec(
            num_scalar_prefetch=3,
            grid=grid,
            in_specs=[
                # signal rows: the input time block is a (clamped) neighbor of j
                pl.BlockSpec((BB, TB),
                             lambda i, j, d, blk, mid, nz: (i, blk[j * n_nb + d])),
                # all distinct band matrices: one constant-index block -> fetched
                # once, kept resident in VMEM for the whole kernel
                pl.BlockSpec((n_mats, TB, TB),
                             lambda i, j, d, blk, mid, nz: (0, 0, 0)),
            ],
            out_specs=pl.BlockSpec((BB, TB),
                                   lambda i, j, d, blk, mid, nz: (i, j)),
            scratch_shapes=[pltpu.VMEM((BB, TB), jnp.float32)],
        ),
        compiler_params=pltpu.CompilerParams(
            dimension_semantics=("parallel", "parallel", "arbitrary")),
    )(jnp.asarray(blk_tbl), jnp.asarray(mat_tbl), jnp.asarray(nz_tbl),
      xf, mats_dev)

    out = out[:B, :t_out]
    return out.reshape(shape[:-1] + (t_out,))


# ---------------------------------------------------------------------------
# Independent float64 numpy reference (direct FIR with the two lowpass filters)
# ---------------------------------------------------------------------------
def _reference(x, cutoff_low, cutoff_high, zeros=8.0, pad=True):
    filters, h = _lowpass_filters([cutoff_low, cutoff_high], zeros)
    w = filters[1] - filters[0]
    shape = x.shape
    T = shape[-1]
    xf = np.asarray(x, dtype=np.float64).reshape(-1, T)
    if pad:
        xf = np.pad(xf, ((0, 0), (h, h)), mode="edge")
    t_out = xf.shape[1] - 2 * h
    out = np.zeros((xf.shape[0], t_out), np.float64)
    for k in range(2 * h + 1):
        out += w[k] * xf[:, k:k + t_out]
    return out.reshape(shape[:-1] + (t_out,))


if __name__ == "__main__":
    key = jax.random.PRNGKey(0)
    # Input [*, T]: batch=2, channels=4, spatial=16, T=128  (B_flat=128 rows)
    x = jax.random.normal(key, (2, 4, 16, 128), dtype=jnp.float32)

    # pad=True (default): output length == input length
    y = jax.block_until_ready(bandpass_filter(x, 1.0 / 4, 1.0 / 3))
    assert y.shape == x.shape
    y_ref = _reference(np.asarray(x), 1.0 / 4, 1.0 / 3)
    # Tolerance covers the documented bf16-operand MXU path (use_bf16=True).
    np.testing.assert_allclose(np.asarray(y, dtype=np.float64), y_ref,
                               atol=2e-2, rtol=1e-3)

    # pad=False: valid convolution, output length T - 2*half_size
    y2 = jax.block_until_ready(bandpass_filter(x, 1.0 / 4, 1.0 / 3, pad=False))
    y2_ref = _reference(np.asarray(x), 1.0 / 4, 1.0 / 3, pad=False)
    assert y2.shape == y2_ref.shape
    np.testing.assert_allclose(np.asarray(y2, dtype=np.float64), y2_ref,
                               atol=2e-2, rtol=1e-3)

    print("KERNEL_OK")
</pallas_src>

<mosaic_0001>
module attributes {stable_mosaic.version = 11 : i64} {
  func.func @kernel(%arg0: i32, %arg1: i32, %arg2: i32, %arg3: memref<1xi32, #tpu.memory_space<smem>>, %arg4: memref<1xi32, #tpu.memory_space<smem>>, %arg5: memref<1xi32, #tpu.memory_space<smem>>, %arg6: memref<128x128xbf16, #tpu.memory_space<vmem>>, %arg7: memref<1x128x128xbf16, #tpu.memory_space<vmem>>, %arg8: memref<128x128xf32, #tpu.memory_space<vmem>>, %arg9: memref<128x128xf32, #tpu.memory_space<vmem>>) attributes {dimension_semantics = [#tpu.dimension_semantics<parallel>, #tpu.dimension_semantics<parallel>, #tpu.dimension_semantics<arbitrary>], iteration_bounds = array<i64: 1, 1, 1>, scalar_prefetch = 3 : i64, scratch_operands = 1 : i64, tpu.core_type = #tpu.core_type<tc>, window_params = [{transform_indices = @transform_0, window_bounds = array<i64: 128, 128>}, {pipeline_mode = #tpu.pipeline_mode<synchronous>, transform_indices = @transform_1, window_bounds = array<i64: 1, 128, 128>}, {transform_indices = @transform_2, window_bounds = array<i64: 128, 128>}]} {
    %c0_i32 = arith.constant 0 : i32
    %0 = arith.cmpi eq, %arg2, %c0_i32 : i32
    %1 = arith.extui %0 : i1 to i32
    %c0_i32_0 = arith.constant 0 : i32
    %2 = arith.cmpi ne, %1, %c0_i32_0 : i32
    scf.if %2 {
      %cst = arith.constant 0.000000e+00 : f32
      %13 = vector.broadcast %cst : f32 to vector<128x128xf32>
      %c0 = arith.constant 0 : index
      %c0_5 = arith.constant 0 : index
      %14 = vector.load %arg9[%c0, %c0_5] : memref<128x128xf32, #tpu.memory_space<vmem>>, vector<128x128xf32>
      tpu.vector_store %arg9[%c0, %c0_5], %13 {strides = array<i32>} : memref<128x128xf32, #tpu.memory_space<vmem>>, vector<128x128xf32>,
    } else {
    }
    %c1_i32 = arith.constant 1 : i32
    %3 = arith.muli %arg1, %c1_i32 : i32
    %4 = arith.addi %3, %arg2 : i32
    %5 = arith.index_cast %4 : i32 to index
    %6 = memref.load %arg5[%5] : memref<1xi32, #tpu.memory_space<smem>>
    %c0_i32_1 = arith.constant 0 : i32
    %7 = arith.cmpi ne, %6, %c0_i32_1 : i32
    %8 = arith.extui %7 : i1 to i32
    %c0_i32_2 = arith.constant 0 : i32
    %9 = arith.cmpi ne, %8, %c0_i32_2 : i32
    scf.if %9 {
      %13 = arith.index_cast %4 : i32 to index
      %14 = memref.load %arg4[%13] : memref<1xi32, #tpu.memory_space<smem>>
      %15 = arith.index_cast %14 : i32 to index
      %c0 = arith.constant 0 : index
      %c0_5 = arith.constant 0 : index
      %16 = vector.load %arg7[%15, %c0, %c0_5] : memref<1x128x128xbf16, #tpu.memory_space<vmem>>, vector<1x128x128xbf16>
      %17 = vector.shape_cast %16 : vector<1x128x128xbf16> to vector<128x128xbf16>
      %c0_6 = arith.constant 0 : index
      %c0_7 = arith.constant 0 : index
      %18 = vector.load %arg9[%c0_6, %c0_7] : memref<128x128xf32, #tpu.memory_space<vmem>>, vector<128x128xf32>
      %c0_8 = arith.constant 0 : index
      %c0_9 = arith.constant 0 : index
      %19 = vector.load %arg6[%c0_8, %c0_9] : memref<128x128xbf16, #tpu.memory_space<vmem>>, vector<128x128xbf16>
      %cst = arith.constant dense<0.000000e+00> : vector<128x128xf32>
      %20 = tpu.matmul %19, %17, %cst {dimension_numbers = #tpu.dot_dimension_numbers<[1], [0], [0], [1], [0, 0, 1, 1], [], []>} : vector<128x128xbf16>, vector<128x128xbf16>, vector<128x128xf32> -> vector<128x128xf32>
      %21 = arith.addf %18, %20 : vector<128x128xf32>
      %c0_10 = arith.constant 0 : index
      %c0_11 = arith.constant 0 : index
      %22 = vector.load %arg9[%c0_10, %c0_11] : memref<128x128xf32, #tpu.memory_space<vmem>>, vector<128x128xf32>
      tpu.vector_store %arg9[%c0_10, %c0_11], %21 {strides = array<i32>} : memref<128x128xf32, #tpu.memory_space<vmem>>, vector<128x128xf32>,
    } else {
    }
    %c0_i32_3 = arith.constant 0 : i32
    %10 = arith.cmpi eq, %arg2, %c0_i32_3 : i32
    %11 = arith.extui %10 : i1 to i32
    %c0_i32_4 = arith.constant 0 : i32
    %12 = arith.cmpi ne, %11, %c0_i32_4 : i32
    scf.if %12 {
      %c0 = arith.constant 0 : index
      %c0_5 = arith.constant 0 : index
      %13 = vector.load %arg9[%c0, %c0_5] : memref<128x128xf32, #tpu.memory_space<vmem>>, vector<128x128xf32>
      %c0_6 = arith.constant 0 : index
      %c0_7 = arith.constant 0 : index
      %14 = vector.load %arg8[%c0_6, %c0_7] : memref<128x128xf32, #tpu.memory_space<vmem>>, vector<128x128xf32>
      tpu.vector_store %arg8[%c0_6, %c0_7], %13 {strides = array<i32>} : memref<128x128xf32, #tpu.memory_space<vmem>>, vector<128x128xf32>,
    } else {
    }
    return
  }
  func.func @transform_0(%arg0: i32, %arg1: i32, %arg2: i32, %arg3: memref<1xi32, #tpu.memory_space<smem>>, %arg4: memref<1xi32, #tpu.memory_space<smem>>, %arg5: memref<1xi32, #tpu.memory_space<smem>>) -> (i32, i32) {
    %c1_i32 = arith.constant 1 : i32
    %0 = arith.muli %arg1, %c1_i32 : i32
    %1 = arith.addi %0, %arg2 : i32
    %2 = arith.index_cast %1 : i32 to index
    %3 = memref.load %arg3[%2] : memref<1xi32, #tpu.memory_space<smem>>
    %c0_i32 = arith.constant 0 : i32
    return %arg0, %3 : i32, i32
  }
  func.func @transform_1(%arg0: i32, %arg1: i32, %arg2: i32, %arg3: memref<1xi32, #tpu.memory_space<smem>>, %arg4: memref<1xi32, #tpu.memory_space<smem>>, %arg5: memref<1xi32, #tpu.memory_space<smem>>) -> (i32, i32, i32) {
    %c0_i32 = arith.constant 0 : i32
    %c0_i32_0 = arith.constant 0 : i32
    %c0_i32_1 = arith.constant 0 : i32
    %c0_i32_2 = arith.constant 0 : i32
    return %c0_i32, %c0_i32_0, %c0_i32_1 : i32, i32, i32
  }
  func.func @transform_2(%arg0: i32, %arg1: i32, %arg2: i32, %arg3: memref<1xi32, #tpu.memory_space<smem>>, %arg4: memref<1xi32, #tpu.memory_space<smem>>, %arg5: memref<1xi32, #tpu.memory_space<smem>>) -> (i32, i32) {
    %c0_i32 = arith.constant 0 : i32
    return %arg0, %arg1 : i32, i32
  }
}

</mosaic_0001>

<llo_original>
// kernel: tpu_custom_call.1
$region0: #{tpu_custom_call.1}
  #allocation0 [shape = 'u32[]', space=smem, size = 0x4, offset = 0x4, fixed_abs, tag = 'smem constant byte address 0x4 - core index']
  #allocation1 [shape = 'u32[144,128]{1,0:T(1,128)}', space=vmem, size = 0x12000, scoped, tag = 'internal scratch']
  #allocation2 [shape = 'f32[128,128]{1,0:T(8,128)}', space=vmem, size = 0x10000, scoped, tag = 'scratch operand']
  #allocation3 [shape = 's32[1]{0}', space=sflag, size = 0x4, scoped, tag = 'scoped memory for tpu_custom_call.1']
  #allocation4 [shape = 's32[1]{0:T(128)S(6)}', space=smem, size = 0x200, scoped, tag = 'prefetched SMEM operand 0']
  #allocation5 [shape = 's32[1]{0:T(128)S(6)}', space=smem, size = 0x200, scoped, tag = 'prefetched SMEM operand 1']
  #allocation6 [shape = 's32[1]{0:T(128)S(6)}', space=smem, size = 0x200, scoped, tag = 'prefetched SMEM operand 2']
  %s0 = inlined_call_operand.<no memory space> [shape: s32[1], index: 0, kind: input, shape index: {}]
  %s1 = inlined_call_operand.<no memory space> [shape: s32[1], index: 1, kind: input, shape index: {}]
  %s2 = inlined_call_operand.<no memory space> [shape: s32[1], index: 2, kind: input, shape index: {}]
  %s3 = inlined_call_operand.hbm [shape: bf16[128,128], index: 3, kind: input, shape index: {}]
  %s4 = inlined_call_operand.hbm [shape: bf16[1,128,128], index: 4, kind: input, shape index: {}]
  %s5 = inlined_call_operand.hbm [shape: f32[128,128], index: 5, kind: output, shape index: {}]
  %s6 = sld [smem:[#allocation0]]
  $region38: #{tpu_custom_call.1} parent=0
    _
  %s8 = ssub.s32 1, %s6
  %s9 = scalar_select 0, %s8, %s6
  %10 = sst [smem:[#allocation4]] %s0
  %11 = sst [smem:[#allocation5]] %s1
  %12 = sst [smem:[#allocation6]] %s2
  $region1: #{tpu_custom_call.1} parent=0
    #allocation7 [shape = 'u8[32768]{0}', space=vmem, size = 0x8000, scoped, tag = 'input window, operand 3, single buffered']
    #allocation8 [shape = 's32[1]{0}', space=sflag, size = 0x4, scoped, tag = 'scoped memory for tpu_custom_call.1']
    #allocation9 [shape = 's32[1]{0}', space=sflag, size = 0x4, scoped, tag = 'scoped memory for tpu_custom_call.1']
    #allocation10 [shape = 'u8[32768]{0}', space=vmem, size = 0x8000, scoped, tag = 'input window, operand 4, single buffered']
    #allocation11 [shape = 's32[1]{0}', space=sflag, size = 0x4, scoped, tag = 'scoped memory for tpu_custom_call.1']
    #allocation12 [shape = 'u8[65536]{0}', space=vmem, size = 0x10000, scoped, tag = 'output window, operand 0, single buffered']
    %13 = vsyncpa [#allocation8], 0
    %14 = vsyncpa [#allocation11], 0
    %15 = vsyncpa [#allocation9], 0
    // Predicated region
    $region2: #{tpu_custom_call.1} parent=1 // pred_check
      _
    $region3: #{tpu_custom_call.1} parent=1 // pred_check_branch
      %17 = sbr.rel (0) target = $region5
    $region4: #{tpu_custom_call.1} parent=1 // pred_region
      %s18 = sadd.s32 0, 0
      %s19 = sld [smem:[#allocation4 + %s18]]
      %s21 = ssub.s32 1024, 1024
      %22 = vsyncadd [#allocation8], %s21
      %s23 = smul.addr %s19, 64
      %s24 = scalar_lea.hbm %s3, %s23
      %s25 = sshll.u32 [#allocation7], 4
      %s26 = int_to_ptr.vmem [resolvable:$true] %s25
      %31 = dma.hbm_to_vmem [thread:$0]  %s24, 1024, %s26, [#allocation8], 64, 64, 4
    $region5: #{tpu_custom_call.1} parent=1 // pred_fallthru
      _
    // Predicated region
    $region6: #{tpu_custom_call.1} parent=1 // pred_check
      _
    $region7: #{tpu_custom_call.1} parent=1 // pred_check_branch
      %33 = sbr.rel (0) target = $region9
    $region8: #{tpu_custom_call.1} parent=1 // pred_region
      %s35 = ssub.s32 1024, 1024
      %36 = vsyncadd [#allocation11], %s35
      %s37 = sshll.u32 [#allocation10], 4
      %s38 = int_to_ptr.vmem [resolvable:$true] %s37
      %43 = dma.hbm_to_vmem [thread:$0]  %s4, 1024, %s38, [#allocation11], 64, 64, 4
    $region9: #{tpu_custom_call.1} parent=1 // pred_fallthru
      _
    // Predicated region
    $region10: #{tpu_custom_call.1} parent=1 // pred_check
      _
    $region11: #{tpu_custom_call.1} parent=1 // pred_check_branch
      %45 = sbr.rel (0) target = $region13
    $region12: #{tpu_custom_call.1} parent=1 // pred_region
      %46 = dma.done [#allocation8], 1024
    $region13: #{tpu_custom_call.1} parent=1 // pred_fallthru
      _
    // Predicated region
    $region14: #{tpu_custom_call.1} parent=1 // pred_check
      _
    $region15: #{tpu_custom_call.1} parent=1 // pred_check_branch
      %48 = sbr.rel (0) target = $region17
    $region16: #{tpu_custom_call.1} parent=1 // pred_region
      %49 = dma.done [#allocation11], 1024
    $region17: #{tpu_custom_call.1} parent=1 // pred_fallthru
      _
    %s50 = sadd.s32 0, 0
    %s51 = sld [smem:[#allocation4 + %s50]]
    %p53 = scmp.eq.s32.totalorder 0, 0
    // Predicated region
    $region18: #{tpu_custom_call.1} parent=1 // pred_check
      %p54 = pneg %p53
    $region19: #{tpu_custom_call.1} parent=1 // pred_check_branch
      %56 = sbr.rel (%p54) target = $region21
    $region20: #{tpu_custom_call.1} parent=1 // pred_region
      %57 = vst [vmem:[#allocation2] sm:$0xff] 0.0
      %58 = vst [vmem:[#allocation2 + $0x8] sm:$0xff] 0.0
      %59 = vst [vmem:[#allocation2 + $0x10] sm:$0xff] 0.0
      %60 = vst [vmem:[#allocation2 + $0x18] sm:$0xff] 0.0
      %61 = vst [vmem:[#allocation2 + $0x20] sm:$0xff] 0.0
      %62 = vst [vmem:[#allocation2 + $0x28] sm:$0xff] 0.0
      %63 = vst [vmem:[#allocation2 + $0x30] sm:$0xff] 0.0
      %64 = vst [vmem:[#allocation2 + $0x38] sm:$0xff] 0.0
      %65 = vst [vmem:[#allocation2 + $0x40] sm:$0xff] 0.0
      %66 = vst [vmem:[#allocation2 + $0x48] sm:$0xff] 0.0
      %67 = vst [vmem:[#allocation2 + $0x50] sm:$0xff] 0.0
      %68 = vst [vmem:[#allocation2 + $0x58] sm:$0xff] 0.0
      %69 = vst [vmem:[#allocation2 + $0x60] sm:$0xff] 0.0
      %70 = vst [vmem:[#allocation2 + $0x68] sm:$0xff] 0.0
      %71 = vst [vmem:[#allocation2 + $0x70] sm:$0xff] 0.0
      %72 = vst [vmem:[#allocation2 + $0x78] sm:$0xff] 0.0
    $region21: #{tpu_custom_call.1} parent=1 // pred_fallthru
      _
    %s73 = sadd.s32 0, 0
    %s74 = sld [smem:[#allocation6 + %s73]]
    %p75 = scmp.ne.s32.totalorder %s74, 0
    // Predicated region
    $region22: #{tpu_custom_call.1} parent=1 // pred_check
      %p76 = pneg %p75
    $region23: #{tpu_custom_call.1} parent=1 // pred_check_branch
      %78 = sbr.rel (%p76) target = $region25
    $region24: #{tpu_custom_call.1} parent=1 // pred_region
      %s79 = sld [smem:[#allocation5 + %s73]]
      %s80 = smul.u32 %s79, 16
      %s81 = smul.addr %s80, 4
      %s82 = scalar_lea.vmem [#allocation10], %s81
      %v83 = vld [vmem:[%s82] sm:$0xf]
      %v84 = vld [vmem:[%s82 + $0x4] sm:$0xf]
      %v85 = vld [vmem:[%s82 + $0x8] sm:$0xf]
      %v86 = vld [vmem:[%s82 + $0xc] sm:$0xf]
      %v87 = vld [vmem:[%s82 + $0x10] sm:$0xf]
      %v88 = vld [vmem:[%s82 + $0x14] sm:$0xf]
      %v89 = vld [vmem:[%s82 + $0x18] sm:$0xf]
      %v90 = vld [vmem:[%s82 + $0x1c] sm:$0xf]
      %v91 = vld [vmem:[%s82 + $0x20] sm:$0xf]
      %v92 = vld [vmem:[%s82 + $0x24] sm:$0xf]
      %v93 = vld [vmem:[%s82 + $0x28] sm:$0xf]
      %v94 = vld [vmem:[%s82 + $0x2c] sm:$0xf]
      %v95 = vld [vmem:[%s82 + $0x30] sm:$0xf]
      %v96 = vld [vmem:[%s82 + $0x34] sm:$0xf]
      %v97 = vld [vmem:[%s82 + $0x38] sm:$0xf]
      %v98 = vld [vmem:[%s82 + $0x3c] sm:$0xf]
      %v99 = vld [vmem:[#allocation2] sm:$0xff]
      %v100 = vld [vmem:[#allocation2 + $0x8] sm:$0xff]
      %v101 = vld [vmem:[#allocation2 + $0x10] sm:$0xff]
      %v102 = vld [vmem:[#allocation2 + $0x18] sm:$0xff]
      %v103 = vld [vmem:[#allocation2 + $0x20] sm:$0xff]
      %v104 = vld [vmem:[#allocation2 + $0x28] sm:$0xff]
      %v105 = vld [vmem:[#allocation2 + $0x30] sm:$0xff]
      %v106 = vld [vmem:[#allocation2 + $0x38] sm:$0xff]
      %v107 = vld [vmem:[#allocation2 + $0x40] sm:$0xff]
      %v108 = vld [vmem:[#allocation2 + $0x48] sm:$0xff]
      %v109 = vld [vmem:[#allocation2 + $0x50] sm:$0xff]
      %v110 = vld [vmem:[#allocation2 + $0x58] sm:$0xff]
      %v111 = vld [vmem:[#allocation2 + $0x60] sm:$0xff]
      %v112 = vld [vmem:[#allocation2 + $0x68] sm:$0xff]
      %v113 = vld [vmem:[#allocation2 + $0x70] sm:$0xff]
      %v114 = vld [vmem:[#allocation2 + $0x78] sm:$0xff]
      %v115 = vld [vmem:[#allocation7] sm:$0xf]
      %v116 = vld [vmem:[#allocation7 + $0x4] sm:$0xf]
      %v117 = vld [vmem:[#allocation7 + $0x8] sm:$0xf]
      %v118 = vld [vmem:[#allocation7 + $0xc] sm:$0xf]
      %v119 = vld [vmem:[#allocation7 + $0x10] sm:$0xf]
      %v120 = vld [vmem:[#allocation7 + $0x14] sm:$0xf]
      %v121 = vld [vmem:[#allocation7 + $0x18] sm:$0xf]
      %v122 = vld [vmem:[#allocation7 + $0x1c] sm:$0xf]
      %v123 = vld [vmem:[#allocation7 + $0x20] sm:$0xf]
      %v124 = vld [vmem:[#allocation7 + $0x24] sm:$0xf]
      %v125 = vld [vmem:[#allocation7 + $0x28] sm:$0xf]
      %v126 = vld [vmem:[#allocation7 + $0x2c] sm:$0xf]
      %v127 = vld [vmem:[#allocation7 + $0x30] sm:$0xf]
      %v128 = vld [vmem:[#allocation7 + $0x34] sm:$0xf]
      %v129 = vld [vmem:[#allocation7 + $0x38] sm:$0xf]
      %v130 = vld [vmem:[#allocation7 + $0x3c] sm:$0xf]
      %v147 = vunpack.c.l.b16 %v115
      %v148 = vunpack.c.l.b16 %v116
      %v149 = vunpack.c.l.b16 %v117
      %v150 = vunpack.c.l.b16 %v118
      %v151 = vunpack.c.l.b16 %v119
      %v152 = vunpack.c.l.b16 %v120
      %v153 = vunpack.c.l.b16 %v121
      %v154 = vunpack.c.l.b16 %v122
      %v155 = vunpack.c.l.b16 %v123
      %v156 = vunpack.c.l.b16 %v124
      %v157 = vunpack.c.l.b16 %v125
      %v158 = vunpack.c.l.b16 %v126
      %v159 = vunpack.c.l.b16 %v127
      %v160 = vunpack.c.l.b16 %v128
      %v161 = vunpack.c.l.b16 %v129
      %v162 = vunpack.c.l.b16 %v130
      %v163 = vpack.c.b16 %v148, %v147
      %v164 = vpack.c.b16 %v150, %v149
      %v165 = vpack.c.b16 %v152, %v151
      %v166 = vpack.c.b16 %v154, %v153
      %v167 = vpack.c.b16 %v156, %v155
      %v168 = vpack.c.b16 %v158, %v157
      %v169 = vpack.c.b16 %v160, %v159
      %v170 = vpack.c.b16 %v162, %v161
      %v195 = vunpack.c.l.b16 %v83
      %v196 = vunpack.c.l.b16 %v84
      %v197 = vunpack.c.l.b16 %v85
      %v198 = vunpack.c.l.b16 %v86
      %v199 = vunpack.c.l.b16 %v87
      %v200 = vunpack.c.l.b16 %v88
      %v201 = vunpack.c.l.b16 %v89
      %v202 = vunpack.c.l.b16 %v90
      %v203 = vunpack.c.l.b16 %v91
      %v204 = vunpack.c.l.b16 %v92
      %v205 = vunpack.c.l.b16 %v93
      %v206 = vunpack.c.l.b16 %v94
      %v207 = vunpack.c.l.b16 %v95
      %v208 = vunpack.c.l.b16 %v96
      %v209 = vunpack.c.l.b16 %v97
      %v210 = vunpack.c.l.b16 %v98
      %v211 = vpack.c.b16 %v196, %v195
      %v212 = vpack.c.b16 %v198, %v197
      %v213 = vpack.c.b16 %v200, %v199
      %v214 = vpack.c.b16 %v202, %v201
      %v215 = vpack.c.b16 %v204, %v203
      %v216 = vpack.c.b16 %v206, %v205
      %v217 = vpack.c.b16 %v208, %v207
      %v218 = vpack.c.b16 %v210, %v209
      %227 = vmatprep.subr.bf16.mxu0 0
      %228 = vmatpush1.bf16.msra.mxu0 %v211
      %229 = vmatprep.subr.bf16.mxu0 0
      %230 = vmatpush1.bf16.msra.mxu0 %v212
      %231 = vmatprep.subr.bf16.mxu0 0
      %232 = vmatpush1.bf16.msra.mxu0 %v213
      %233 = vmatprep.subr.bf16.mxu0 0
      %234 = vmatpush1.bf16.msra.mxu0 %v214
      %235 = vmatprep.subr.bf16.mxu0 0
      %236 = vmatpush1.bf16.msra.mxu0 %v215
      %237 = vmatprep.subr.bf16.mxu0 0
      %238 = vmatpush1.bf16.msra.mxu0 %v216
      %239 = vmatprep.subr.bf16.mxu0 0
      %240 = vmatpush1.bf16.msra.mxu0 %v217
      %241 = vmatprep.subr.bf16.mxu0 0
      %242 = vmatpush1.bf16.msra.mxu0 %v218
      %243 = vmatprep.subr.bf16.mxu0 0
      %244 = vmatpush1.bf16.msra.mxu0 0
      %245 = vmatprep.subr.bf16.mxu0 0
      %246 = vmatpush1.bf16.msra.mxu0 0
      %247 = vmatprep.subr.bf16.mxu0 0
      %248 = vmatpush1.bf16.msra.mxu0 0
      %249 = vmatprep.subr.bf16.mxu0 0
      %250 = vmatpush1.bf16.msra.mxu0 0
      %251 = vmatprep.subr.bf16.mxu0 0
      %252 = vmatpush1.bf16.msra.mxu0 0
      %253 = vmatprep.subr.bf16.mxu0 0
      %254 = vmatpush1.bf16.msra.mxu0 0
      %255 = vmatprep.subr.bf16.mxu0 0
      %256 = vmatpush1.bf16.msra.mxu0 0
      %257 = vmatprep.subr.bf16.mxu0 0
      %258 = vmatpush1.bf16.msra.mxu0 0
      %259 = vmatprep.mubr.bf16.mxu0 0
      %260 = vmatmul.mubr.bf16.gmra.mrb[0].mxu0 %v163
      %v261 = vpop.f32.mrb[0].mxu0
      %v262 = vadd.f32 0.0, %v261
      %v263 = vpop.f32.mrb[0].mxu0
      %v264 = vpop.f32.mrb[0].mxu0
      %v265 = vadd.f32 0.0, %v264
      %v266 = vpop.f32.mrb[0].mxu0
      %267 = vmatprep.mubr.bf16.mxu0 0
      %268 = vmatmul.mubr.bf16.gmra.mrb[0].mxu0 %v164
      %v269 = vpop.f32.mrb[0].mxu0
      %v270 = vadd.f32 0.0, %v269
      %v271 = vpop.f32.mrb[0].mxu0
      %v272 = vpop.f32.mrb[0].mxu0
      %v273 = vadd.f32 0.0, %v272
      %v274 = vpop.f32.mrb[0].mxu0
      %275 = vmatprep.mubr.bf16.mxu0 0
      %276 = vmatmul.mubr.bf16.gmra.mrb[0].mxu0 %v165
      %v277 = vpop.f32.mrb[0].mxu0
      %v278 = vadd.f32 0.0, %v277
      %v279 = vpop.f32.mrb[0].mxu0
      %v280 = vpop.f32.mrb[0].mxu0
      %v281 = vadd.f32 0.0, %v280
      %v282 = vpop.f32.mrb[0].mxu0
      %283 = vmatprep.mubr.bf16.mxu0 0
      %284 = vmatmul.mubr.bf16.gmra.mrb[0].mxu0 %v166
      %v285 = vpop.f32.mrb[0].mxu0
      %v286 = vadd.f32 0.0, %v285
      %v287 = vpop.f32.mrb[0].mxu0
      %v288 = vpop.f32.mrb[0].mxu0
      %v289 = vadd.f32 0.0, %v288
      %v290 = vpop.f32.mrb[0].mxu0
      %291 = vmatprep.mubr.bf16.mxu0 0
      %292 = vmatmul.mubr.bf16.gmra.mrb[0].mxu0 %v167
      %v293 = vpop.f32.mrb[0].mxu0
      %v294 = vadd.f32 0.0, %v293
      %v295 = vpop.f32.mrb[0].mxu0
      %v296 = vpop.f32.mrb[0].mxu0
      %v297 = vadd.f32 0.0, %v296
      %v298 = vpop.f32.mrb[0].mxu0
      %299 = vmatprep.mubr.bf16.mxu0 0
      %300 = vmatmul.mubr.bf16.gmra.mrb[0].mxu0 %v168
      %v301 = vpop.f32.mrb[0].mxu0
      %v302 = vadd.f32 0.0, %v301
      %v303 = vpop.f32.mrb[0].mxu0
      %v304 = vpop.f32.mrb[0].mxu0
      %v305 = vadd.f32 0.0, %v304
      %v306 = vpop.f32.mrb[0].mxu0
      %307 = vmatprep.mubr.bf16.mxu0 0
      %308 = vmatmul.mubr.bf16.gmra.mrb[0].mxu0 %v169
      %v309 = vpop.f32.mrb[0].mxu0
      %v310 = vadd.f32 0.0, %v309
      %v311 = vpop.f32.mrb[0].mxu0
      %v312 = vpop.f32.mrb[0].mxu0
      %v313 = vadd.f32 0.0, %v312
      %v314 = vpop.f32.mrb[0].mxu0
      %315 = vmatprep.mubr.bf16.mxu0 0
      %316 = vmatmul.mubr.bf16.gmra.mrb[0].mxu0 %v170
      %v317 = vpop.f32.mrb[0].mxu0
      %v318 = vadd.f32 0.0, %v317
      %v319 = vpop.f32.mrb[0].mxu0
      %v320 = vpop.f32.mrb[0].mxu0
      %v321 = vadd.f32 0.0, %v320
      %v322 = vpop.f32.mrb[0].mxu0
      %323 = vdwg.mxu0
      %v324 = vadd.f32 %v99, %v262
      %v325 = vadd.f32 %v100, %v265
      %v326 = vadd.f32 %v101, %v270
      %v327 = vadd.f32 %v102, %v273
      %v328 = vadd.f32 %v103, %v278
      %v329 = vadd.f32 %v104, %v281
      %v330 = vadd.f32 %v105, %v286
      %v331 = vadd.f32 %v106, %v289
      %v332 = vadd.f32 %v107, %v294
      %v333 = vadd.f32 %v108, %v297
      %v334 = vadd.f32 %v109, %v302
      %v335 = vadd.f32 %v110, %v305
      %v336 = vadd.f32 %v111, %v310
      %v337 = vadd.f32 %v112, %v313
      %v338 = vadd.f32 %v113, %v318
      %v339 = vadd.f32 %v114, %v321
      %340 = vst [vmem:[#allocation2] sm:$0xff] %v324
      %341 = vst [vmem:[#allocation2 + $0x8] sm:$0xff] %v325
      %342 = vst [vmem:[#allocation2 + $0x10] sm:$0xff] %v326
      %343 = vst [vmem:[#allocation2 + $0x18] sm:$0xff] %v327
      %344 = vst [vmem:[#allocation2 + $0x20] sm:$0xff] %v328
      %345 = vst [vmem:[#allocation2 + $0x28] sm:$0xff] %v329
      %346 = vst [vmem:[#allocation2 + $0x30] sm:$0xff] %v330
      %347 = vst [vmem:[#allocation2 + $0x38] sm:$0xff] %v331
      %348 = vst [vmem:[#allocation2 + $0x40] sm:$0xff] %v332
      %349 = vst [vmem:[#allocation2 + $0x48] sm:$0xff] %v333
      %350 = vst [vmem:[#allocation2 + $0x50] sm:$0xff] %v334
      %351 = vst [vmem:[#allocation2 + $0x58] sm:$0xff] %v335
      %352 = vst [vmem:[#allocation2 + $0x60] sm:$0xff] %v336
      %353 = vst [vmem:[#allocation2 + $0x68] sm:$0xff] %v337
      %354 = vst [vmem:[#allocation2 + $0x70] sm:$0xff] %v338
      %355 = vst [vmem:[#allocation2 + $0x78] sm:$0xff] %v339
    $region25: #{tpu_custom_call.1} parent=1 // pred_fallthru
      _
    // Predicated region
    $region26: #{tpu_custom_call.1} parent=1 // pred_check
      %p356 = pneg %p53
    $region27: #{tpu_custom_call.1} parent=1 // pred_check_branch
      %358 = sbr.rel (%p356) target = $region29
    $region28: #{tpu_custom_call.1} parent=1 // pred_region
      %v359 = vld [vmem:[#allocation2] sm:$0xff]
      %v360 = vld [vmem:[#allocation2 + $0x8] sm:$0xff]
      %v361 = vld [vmem:[#allocation2 + $0x10] sm:$0xff]
      %v362 = vld [vmem:[#allocation2 + $0x18] sm:$0xff]
      %v363 = vld [vmem:[#allocation2 + $0x20] sm:$0xff]
      %v364 = vld [vmem:[#allocation2 + $0x28] sm:$0xff]
      %v365 = vld [vmem:[#allocation2 + $0x30] sm:$0xff]
      %v366 = vld [vmem:[#allocation2 + $0x38] sm:$0xff]
      %v367 = vld [vmem:[#allocation2 + $0x40] sm:$0xff]
      %v368 = vld [vmem:[#allocation2 + $0x48] sm:$0xff]
      %v369 = vld [vmem:[#allocation2 + $0x50] sm:$0xff]
      %v370 = vld [vmem:[#allocation2 + $0x58] sm:$0xff]
      %v371 = vld [vmem:[#allocation2 + $0x60] sm:$0xff]
      %v372 = vld [vmem:[#allocation2 + $0x68] sm:$0xff]
      %v373 = vld [vmem:[#allocation2 + $0x70] sm:$0xff]
      %v374 = vld [vmem:[#allocation2 + $0x78] sm:$0xff]
      %375 = vst [vmem:[#allocation12] sm:$0xff] %v359
      %376 = vst [vmem:[#allocation12 + $0x8] sm:$0xff] %v360
      %377 = vst [vmem:[#allocation12 + $0x10] sm:$0xff] %v361
      %378 = vst [vmem:[#allocation12 + $0x18] sm:$0xff] %v362
      %379 = vst [vmem:[#allocation12 + $0x20] sm:$0xff] %v363
      %380 = vst [vmem:[#allocation12 + $0x28] sm:$0xff] %v364
      %381 = vst [vmem:[#allocation12 + $0x30] sm:$0xff] %v365
      %382 = vst [vmem:[#allocation12 + $0x38] sm:$0xff] %v366
      %383 = vst [vmem:[#allocation12 + $0x40] sm:$0xff] %v367
      %384 = vst [vmem:[#allocation12 + $0x48] sm:$0xff] %v368
      %385 = vst [vmem:[#allocation12 + $0x50] sm:$0xff] %v369
      %386 = vst [vmem:[#allocation12 + $0x58] sm:$0xff] %v370
      %387 = vst [vmem:[#allocation12 + $0x60] sm:$0xff] %v371
      %388 = vst [vmem:[#allocation12 + $0x68] sm:$0xff] %v372
      %389 = vst [vmem:[#allocation12 + $0x70] sm:$0xff] %v373
      %390 = vst [vmem:[#allocation12 + $0x78] sm:$0xff] %v374
    $region29: #{tpu_custom_call.1} parent=1 // pred_fallthru
      _
    // Predicated region
    $region30: #{tpu_custom_call.1} parent=1 // pred_check
      _
    $region31: #{tpu_custom_call.1} parent=1 // pred_check_branch
      %392 = sbr.rel (0) target = $region33
    $region32: #{tpu_custom_call.1} parent=1 // pred_region
      %s394 = ssub.s32 2048, 2048
      %395 = vsyncadd [#allocation9], %s394
      %s396 = sshll.u32 [#allocation12], 4
      %s397 = int_to_ptr.vmem [resolvable:$true] %s396
      %402 = dma.vmem_to_hbm [thread:$0]  %s397, 2048, %s5, [#allocation9], 128, 128, 8
    $region33: #{tpu_custom_call.1} parent=1 // pred_fallthru
      _
    // Predicated region
    $region34: #{tpu_custom_call.1} parent=1 // pred_check
      _
    $region35: #{tpu_custom_call.1} parent=1 // pred_check_branch
      %404 = sbr.rel (0) target = $region37
    $region36: #{tpu_custom_call.1} parent=1 // pred_region
      %405 = dma.done [#allocation9], 2048
    $region37: #{tpu_custom_call.1} parent=1 // pred_fallthru
      _
    %406 = vsyncpa [#allocation8], 1
    %407 = vsyncpa [#allocation11], 1
    %408 = vsyncpa [#allocation9], 1

</llo_original>
